<compile_context>
chip_gen: v6e
topology: v6e:2x2x1
jax: 0.10.0
libtpu: 0.0.40
codegen_flags: <defaults>
</compile_context>

<pallas_src>
import jax
import jax.numpy as jnp
from jax.experimental import pallas as pl
from jax.experimental.pallas import tpu as pltpu

IN_F = 5          # logical input features
HID = 100         # logical hidden width
OUT_F = 2         # logical output features

PAD_IN = 8        # sublane-aligned K for the first layer
PAD_H = 128       # lane-aligned hidden width
PAD_OUT = 8       # narrow output slab (16x less write traffic than 128-wide)
MAX_TB = 4096     # upper bound on rows per grid step (VMEM-safe on v5e/v6e/v7x)


def mlp_kernel(x_ref, w1_ref, wh_ref, bh_ref, w5_ref, b5_ref, o_ref):
    bh = bh_ref[...]                                    # (4, 128) f32 biases, layers 1-4

    # Layer 1: exact f32 (TB, 8) @ (8, 128) -- K=8 is tiny, keep input precision.
    h = jnp.dot(x_ref[...], w1_ref[...], preferred_element_type=jnp.float32)
    h = jnp.maximum(h + bh[0:1, :], 0.0)

    # Layers 2-4: clean (TB,128)@(128,128) MXU tiles, bf16 inputs / f32 accumulation.
    for i in range(3):
        h = jnp.dot(h.astype(jnp.bfloat16), wh_ref[i],
                    preferred_element_type=jnp.float32)
        h = jnp.maximum(h + bh[i + 1:i + 2, :], 0.0)

    # Output layer: (TB,128)@(128,8) -> narrow store; real logits live in cols [:2].
    out = jnp.dot(h.astype(jnp.bfloat16), w5_ref[...],
                  preferred_element_type=jnp.float32) + b5_ref[...]
    o_ref[...] = out.astype(o_ref.dtype)


def _choose_tb(batch):
    """Batch tile: large (to amortize per-step overhead), multiple of 8, and split
    into >=2 tiles when there is enough work so both v7x TensorCores are used."""
    b8 = max(8, ((batch + 7) // 8) * 8)
    tb = min(b8, MAX_TB)
    if b8 > 1024 and tb >= b8:          # enough work but only one tile -> split in 2
        tb = (((b8 // 2) + 7) // 8) * 8
    return tb


@jax.jit
def _net_forward_padded(x, w1, wh, bh, w5, b5):
    B = x.shape[0]
    tb = _choose_tb(B)
    n_tiles = pl.cdiv(B, tb)
    b_pad = n_tiles * tb

    xp = jnp.pad(x.astype(jnp.float32),
                 ((0, b_pad - B), (0, PAD_IN - x.shape[1])))

    resident = lambda shape: pl.BlockSpec(shape, lambda i, _s=len: (0,) * len(shape))
    out = pl.pallas_call(
        mlp_kernel,
        out_shape=jax.ShapeDtypeStruct((b_pad, PAD_OUT), jnp.float32),
        grid=(n_tiles,),
        in_specs=[
            pl.BlockSpec((tb, PAD_IN), lambda i: (i, 0)),   # x: batch-tiled, pipelined
            resident((PAD_IN, PAD_H)),                      # w1 (f32)
            resident((3, PAD_H, PAD_H)),                    # w2..w4 stacked (bf16)
            resident((4, PAD_H)),                           # b1..b4 stacked (f32)
            resident((PAD_H, PAD_OUT)),                     # w5 (bf16)
            resident((1, PAD_OUT)),                         # b5 (f32)
        ],
        out_specs=pl.BlockSpec((tb, PAD_OUT), lambda i: (i, 0)),
        compiler_params=pltpu.CompilerParams(
            dimension_semantics=("parallel",),   # shards batch tiles across v7x TCs
            vmem_limit_bytes=32 * 1024 * 1024,   # safe on v5e/v6e/v7x; usage ~a few MiB
        ),
    )(xp, w1, wh, bh, w5, b5)
    return out[:B, :OUT_F]


def _pad2(a, rows, cols, dtype):
    out = jnp.zeros((rows, cols), jnp.float32)
    out = out.at[:a.shape[0], :a.shape[1]].set(a)
    return out.astype(dtype)


def prepare_padded_params(params):
    """Zero-pad & pack params once (call at init; padded lanes are exact zeros)."""
    w1 = _pad2(params["w1"], PAD_IN, PAD_H, jnp.float32)
    wh = jnp.stack([_pad2(params[f"w{i}"], PAD_H, PAD_H, jnp.bfloat16)
                    for i in (2, 3, 4)], axis=0)                       # (3,128,128)
    bh = jnp.concatenate([_pad2(params[f"b{i}"], 1, PAD_H, jnp.float32)
                          for i in (1, 2, 3, 4)], axis=0)              # (4,128)
    w5 = _pad2(params["w5"], PAD_H, PAD_OUT, jnp.bfloat16)             # (128,8)
    b5 = _pad2(params["b5"], 1, PAD_OUT, jnp.float32)                  # (1,8)
    return {"w1": w1, "wh": wh, "bh": bh, "w5": w5, "b5": b5}


def net_forward(x, padded):
    """x: (B, 5) float32 -> (B, 2) float32."""
    return _net_forward_padded(x, padded["w1"], padded["wh"], padded["bh"],
                               padded["w5"], padded["b5"])


def init_params(key):
    """Deterministic init mirroring nn.Linear shapes (stored as (in, out))."""
    dims = [(IN_F, HID), (HID, HID), (HID, HID), (HID, HID), (HID, OUT_F)]
    params = {}
    keys = jax.random.split(key, 2 * len(dims))
    for i, (fan_in, fan_out) in enumerate(dims):
        bound = 1.0 / jnp.sqrt(float(fan_in))  # PyTorch default U(-1/sqrt(fan_in), ..)
        w = jax.random.uniform(keys[2 * i], (fan_in, fan_out),
                               minval=-bound, maxval=bound, dtype=jnp.float32)
        b = jax.random.uniform(keys[2 * i + 1], (1, fan_out),
                               minval=-bound, maxval=bound, dtype=jnp.float32)
        params[f"w{i+1}"] = w
        params[f"b{i+1}"] = b
    return params


def reference_forward(x, params):
    """Pure f32 reference of the original PyTorch forward."""
    h = x
    for i in range(1, 5):
        h = jnp.maximum(h @ params[f"w{i}"] + params[f"b{i}"], 0.0)
    return h @ params["w5"] + params["b5"]


if __name__ == "__main__":
    key = jax.random.PRNGKey(0)
    pkey, xkey1, xkey2 = jax.random.split(key, 3)
    params = init_params(pkey)
    padded = prepare_padded_params(params)   # hoisted: padded/packed once

    # Small-batch check (single tile).
    B1 = 8
    x1 = jax.random.normal(xkey1, (B1, IN_F), dtype=jnp.float32)
    out1 = jax.block_until_ready(net_forward(x1, padded))
    ref1 = reference_forward(x1, params)
    assert out1.shape == (B1, OUT_F)
    assert jnp.allclose(out1, ref1, atol=5e-2, rtol=5e-2), (out1, ref1)

    # Larger-batch check (exercises the adaptive multi-tile + batch-padding path).
    B2 = 2500
    x2 = jax.random.normal(xkey2, (B2, IN_F), dtype=jnp.float32)
    out2 = jax.block_until_ready(net_forward(x2, padded))
    ref2 = reference_forward(x2, params)
    assert out2.shape == (B2, OUT_F)
    # bf16 hidden-layer matmul inputs with f32 accumulation -> loosened tolerance.
    assert jnp.allclose(out2, ref2, atol=5e-2, rtol=5e-2)

    print("KERNEL_OK")
</pallas_src>

<mosaic_0001>
module attributes {stable_mosaic.version = 11 : i64} {
  func.func @mlp_kernel(%arg0: i32, %arg1: memref<8x8xf32, #tpu.memory_space<vmem>>, %arg2: memref<8x128xf32, #tpu.memory_space<vmem>>, %arg3: memref<3x128x128xbf16, #tpu.memory_space<vmem>>, %arg4: memref<4x128xf32, #tpu.memory_space<vmem>>, %arg5: memref<128x8xbf16, #tpu.memory_space<vmem>>, %arg6: memref<1x8xf32, #tpu.memory_space<vmem>>, %arg7: memref<8x8xf32, #tpu.memory_space<vmem>>) attributes {dimension_semantics = [#tpu.dimension_semantics<parallel>], iteration_bounds = array<i64: 1>, scalar_prefetch = 0 : i64, scratch_operands = 0 : i64, tpu.core_type = #tpu.core_type<tc>, window_params = [{transform_indices = @transform_0, window_bounds = array<i64: 8, 8>}, {pipeline_mode = #tpu.pipeline_mode<synchronous>, transform_indices = @transform_1, window_bounds = array<i64: 8, 128>}, {pipeline_mode = #tpu.pipeline_mode<synchronous>, transform_indices = @transform_2, window_bounds = array<i64: 3, 128, 128>}, {pipeline_mode = #tpu.pipeline_mode<synchronous>, transform_indices = @transform_3, window_bounds = array<i64: 4, 128>}, {pipeline_mode = #tpu.pipeline_mode<synchronous>, transform_indices = @transform_4, window_bounds = array<i64: 128, 8>}, {pipeline_mode = #tpu.pipeline_mode<synchronous>, transform_indices = @transform_5, window_bounds = array<i64: 1, 8>}, {transform_indices = @transform_6, window_bounds = array<i64: 8, 8>}]} {
    %c0 = arith.constant 0 : index
    %c0_0 = arith.constant 0 : index
    %0 = vector.load %arg4[%c0, %c0_0] : memref<4x128xf32, #tpu.memory_space<vmem>>, vector<4x128xf32>
    %c0_1 = arith.constant 0 : index
    %c0_2 = arith.constant 0 : index
    %1 = vector.load %arg1[%c0_1, %c0_2] : memref<8x8xf32, #tpu.memory_space<vmem>>, vector<8x8xf32>
    %c0_3 = arith.constant 0 : index
    %c0_4 = arith.constant 0 : index
    %2 = vector.load %arg2[%c0_3, %c0_4] : memref<8x128xf32, #tpu.memory_space<vmem>>, vector<8x128xf32>
    %cst = arith.constant dense<0.000000e+00> : vector<8x128xf32>
    %3 = tpu.matmul %1, %2, %cst {dimension_numbers = #tpu.dot_dimension_numbers<[1], [0], [0], [1], [0, 0, 1, 1], [], []>} : vector<8x8xf32>, vector<8x128xf32>, vector<8x128xf32> -> vector<8x128xf32>
    %4 = vector.extract_strided_slice %0 {offsets = [0, 0], sizes = [1, 128], strides = [1, 1]} : vector<4x128xf32> to vector<1x128xf32>
    %5 = vector.broadcast %4 : vector<1x128xf32> to vector<8x128xf32>
    %6 = arith.addf %3, %5 : vector<8x128xf32>
    %cst_5 = arith.constant 0.000000e+00 : f32
    %7 = vector.broadcast %cst_5 : f32 to vector<8x128xf32>
    %8 = arith.maximumf %6, %7 : vector<8x128xf32>
    %9 = arith.truncf %8 : vector<8x128xf32> to vector<8x128xbf16>
    %c0_6 = arith.constant 0 : index
    %c0_7 = arith.constant 0 : index
    %c0_8 = arith.constant 0 : index
    %10 = vector.load %arg3[%c0_6, %c0_7, %c0_8] : memref<3x128x128xbf16, #tpu.memory_space<vmem>>, vector<1x128x128xbf16>
    %11 = vector.shape_cast %10 : vector<1x128x128xbf16> to vector<128x128xbf16>
    %cst_9 = arith.constant dense<0.000000e+00> : vector<8x128xf32>
    %12 = tpu.matmul %9, %11, %cst_9 {dimension_numbers = #tpu.dot_dimension_numbers<[1], [0], [0], [1], [0, 0, 1, 1], [], []>} : vector<8x128xbf16>, vector<128x128xbf16>, vector<8x128xf32> -> vector<8x128xf32>
    %13 = vector.extract_strided_slice %0 {offsets = [1, 0], sizes = [1, 128], strides = [1, 1]} : vector<4x128xf32> to vector<1x128xf32>
    %14 = vector.broadcast %13 : vector<1x128xf32> to vector<8x128xf32>
    %15 = arith.addf %12, %14 : vector<8x128xf32>
    %cst_10 = arith.constant 0.000000e+00 : f32
    %16 = vector.broadcast %cst_10 : f32 to vector<8x128xf32>
    %17 = arith.maximumf %15, %16 : vector<8x128xf32>
    %18 = arith.truncf %17 : vector<8x128xf32> to vector<8x128xbf16>
    %c1 = arith.constant 1 : index
    %c0_11 = arith.constant 0 : index
    %c0_12 = arith.constant 0 : index
    %19 = vector.load %arg3[%c1, %c0_11, %c0_12] : memref<3x128x128xbf16, #tpu.memory_space<vmem>>, vector<1x128x128xbf16>
    %20 = vector.shape_cast %19 : vector<1x128x128xbf16> to vector<128x128xbf16>
    %cst_13 = arith.constant dense<0.000000e+00> : vector<8x128xf32>
    %21 = tpu.matmul %18, %20, %cst_13 {dimension_numbers = #tpu.dot_dimension_numbers<[1], [0], [0], [1], [0, 0, 1, 1], [], []>} : vector<8x128xbf16>, vector<128x128xbf16>, vector<8x128xf32> -> vector<8x128xf32>
    %22 = vector.extract_strided_slice %0 {offsets = [2, 0], sizes = [1, 128], strides = [1, 1]} : vector<4x128xf32> to vector<1x128xf32>
    %23 = vector.broadcast %22 : vector<1x128xf32> to vector<8x128xf32>
    %24 = arith.addf %21, %23 : vector<8x128xf32>
    %cst_14 = arith.constant 0.000000e+00 : f32
    %25 = vector.broadcast %cst_14 : f32 to vector<8x128xf32>
    %26 = arith.maximumf %24, %25 : vector<8x128xf32>
    %27 = arith.truncf %26 : vector<8x128xf32> to vector<8x128xbf16>
    %c2 = arith.constant 2 : index
    %c0_15 = arith.constant 0 : index
    %c0_16 = arith.constant 0 : index
    %28 = vector.load %arg3[%c2, %c0_15, %c0_16] : memref<3x128x128xbf16, #tpu.memory_space<vmem>>, vector<1x128x128xbf16>
    %29 = vector.shape_cast %28 : vector<1x128x128xbf16> to vector<128x128xbf16>
    %cst_17 = arith.constant dense<0.000000e+00> : vector<8x128xf32>
    %30 = tpu.matmul %27, %29, %cst_17 {dimension_numbers = #tpu.dot_dimension_numbers<[1], [0], [0], [1], [0, 0, 1, 1], [], []>} : vector<8x128xbf16>, vector<128x128xbf16>, vector<8x128xf32> -> vector<8x128xf32>
    %31 = vector.extract_strided_slice %0 {offsets = [3, 0], sizes = [1, 128], strides = [1, 1]} : vector<4x128xf32> to vector<1x128xf32>
    %32 = vector.broadcast %31 : vector<1x128xf32> to vector<8x128xf32>
    %33 = arith.addf %30, %32 : vector<8x128xf32>
    %cst_18 = arith.constant 0.000000e+00 : f32
    %34 = vector.broadcast %cst_18 : f32 to vector<8x128xf32>
    %35 = arith.maximumf %33, %34 : vector<8x128xf32>
    %36 = arith.truncf %35 : vector<8x128xf32> to vector<8x128xbf16>
    %c0_19 = arith.constant 0 : index
    %c0_20 = arith.constant 0 : index
    %37 = vector.load %arg5[%c0_19, %c0_20] : memref<128x8xbf16, #tpu.memory_space<vmem>>, vector<128x8xbf16>
    %cst_21 = arith.constant dense<0.000000e+00> : vector<8x8xf32>
    %38 = tpu.matmul %36, %37, %cst_21 {dimension_numbers = #tpu.dot_dimension_numbers<[1], [0], [0], [1], [0, 0, 1, 1], [], []>} : vector<8x128xbf16>, vector<128x8xbf16>, vector<8x8xf32> -> vector<8x8xf32>
    %c0_22 = arith.constant 0 : index
    %c0_23 = arith.constant 0 : index
    %39 = vector.load %arg6[%c0_22, %c0_23] : memref<1x8xf32, #tpu.memory_space<vmem>>, vector<1x8xf32>
    %40 = vector.broadcast %39 : vector<1x8xf32> to vector<8x8xf32>
    %41 = arith.addf %38, %40 : vector<8x8xf32>
    %c0_24 = arith.constant 0 : index
    %c0_25 = arith.constant 0 : index
    %42 = vector.load %arg7[%c0_24, %c0_25] : memref<8x8xf32, #tpu.memory_space<vmem>>, vector<8x8xf32>
    tpu.vector_store %arg7[%c0_24, %c0_25], %41 {strides = array<i32>} : memref<8x8xf32, #tpu.memory_space<vmem>>, vector<8x8xf32>,
    return
  }
  func.func @transform_0(%arg0: i32) -> (i32, i32) {
    %c0_i32 = arith.constant 0 : i32
    %c0_i32_0 = arith.constant 0 : i32
    return %arg0, %c0_i32 : i32, i32
  }
  func.func @transform_1(%arg0: i32) -> (i32, i32) {
    %c0_i32 = arith.constant 0 : i32
    %c0_i32_0 = arith.constant 0 : i32
    %c0_i32_1 = arith.constant 0 : i32
    return %c0_i32, %c0_i32_0 : i32, i32
  }
  func.func @transform_2(%arg0: i32) -> (i32, i32, i32) {
    %c0_i32 = arith.constant 0 : i32
    %c0_i32_0 = arith.constant 0 : i32
    %c0_i32_1 = arith.constant 0 : i32
    %c0_i32_2 = arith.constant 0 : i32
    return %c0_i32, %c0_i32_0, %c0_i32_1 : i32, i32, i32
  }
  func.func @transform_3(%arg0: i32) -> (i32, i32) {
    %c0_i32 = arith.constant 0 : i32
    %c0_i32_0 = arith.constant 0 : i32
    %c0_i32_1 = arith.constant 0 : i32
    return %c0_i32, %c0_i32_0 : i32, i32
  }
  func.func @transform_4(%arg0: i32) -> (i32, i32) {
    %c0_i32 = arith.constant 0 : i32
    %c0_i32_0 = arith.constant 0 : i32
    %c0_i32_1 = arith.constant 0 : i32
    return %c0_i32, %c0_i32_0 : i32, i32
  }
  func.func @transform_5(%arg0: i32) -> (i32, i32) {
    %c0_i32 = arith.constant 0 : i32
    %c0_i32_0 = arith.constant 0 : i32
    %c0_i32_1 = arith.constant 0 : i32
    return %c0_i32, %c0_i32_0 : i32, i32
  }
  func.func @transform_6(%arg0: i32) -> (i32, i32) {
    %c0_i32 = arith.constant 0 : i32
    %c0_i32_0 = arith.constant 0 : i32
    return %arg0, %c0_i32 : i32, i32
  }
}

</mosaic_0001>

<llo_original>
// kernel: _net_forward_padded.1
$region0: #{_net_forward_padded.1}
  #allocation0 [shape = 'u32[]', space=smem, size = 0x4, offset = 0x4, fixed_abs, tag = 'smem constant byte address 0x4 - core index']
  #allocation1 [shape = 'u32[144,128]{1,0:T(1,128)}', space=vmem, size = 0x12000, scoped, tag = 'internal scratch']
  %s0 = inlined_call_operand.vmem [shape: f32[8,8], index: 0, kind: input, shape index: {}]
  %s1 = inlined_call_operand.vmem [shape: f32[8,128], index: 1, kind: input, shape index: {}]
  %s2 = inlined_call_operand.hbm [shape: bf16[3,128,128], index: 2, kind: input, shape index: {}]
  %s3 = inlined_call_operand.vmem [shape: f32[4,128], index: 3, kind: input, shape index: {}]
  %s4 = inlined_call_operand.vmem [shape: bf16[128,8], index: 4, kind: input, shape index: {}]
  %s5 = inlined_call_operand.vmem [shape: f32[1,8], index: 5, kind: input, shape index: {}]
  %s6 = inlined_call_operand.vmem [shape: f32[8,8], index: 6, kind: output, shape index: {}]
  %s7 = sld [smem:[#allocation0]]
  $region38: #{_net_forward_padded.1} parent=0
    _
  %s9 = ssub.s32 1, %s7
  %s10 = scalar_select 0, %s9, %s7
  $region1: #{_net_forward_padded.1} parent=0
    #allocation2 [shape = 'u8[98304]{0}', space=vmem, size = 0x18000, scoped, tag = 'input window, operand 2, single buffered']
    #allocation3 [shape = 's32[1]{0}', space=sflag, size = 0x4, scoped, tag = 'scoped memory for _net_forward_padded.1']
    %11 = vsyncpa [#allocation3], 0
    // Predicated region
    $region2: #{_net_forward_padded.1} parent=1 // pred_check
      _
    $region3: #{_net_forward_padded.1} parent=1 // pred_check_branch
      %13 = sbr.rel (0) target = $region5
    $region4: #{_net_forward_padded.1} parent=1 // pred_region
      _
    $region5: #{_net_forward_padded.1} parent=1 // pred_fallthru
      _
    // Predicated region
    $region6: #{_net_forward_padded.1} parent=1 // pred_check
      _
    $region7: #{_net_forward_padded.1} parent=1 // pred_check_branch
      %15 = sbr.rel (0) target = $region9
    $region8: #{_net_forward_padded.1} parent=1 // pred_region
      _
    $region9: #{_net_forward_padded.1} parent=1 // pred_fallthru
      _
    // Predicated region
    $region10: #{_net_forward_padded.1} parent=1 // pred_check
      _
    $region11: #{_net_forward_padded.1} parent=1 // pred_check_branch
      %17 = sbr.rel (0) target = $region13
    $region12: #{_net_forward_padded.1} parent=1 // pred_region
      %s19 = ssub.s32 3072, 3072
      %20 = vsyncadd [#allocation3], %s19
      %s21 = sshll.u32 [#allocation2], 4
      %s22 = int_to_ptr.vmem [resolvable:$true] %s21
      %27 = dma.hbm_to_vmem [thread:$0]  %s2, 3072, %s22, [#allocation3], 64, 64, 4
    $region13: #{_net_forward_padded.1} parent=1 // pred_fallthru
      _
    // Predicated region
    $region14: #{_net_forward_padded.1} parent=1 // pred_check
      _
    $region15: #{_net_forward_padded.1} parent=1 // pred_check_branch
      %29 = sbr.rel (0) target = $region17
    $region16: #{_net_forward_padded.1} parent=1 // pred_region
      _
    $region17: #{_net_forward_padded.1} parent=1 // pred_fallthru
      _
    // Predicated region
    $region18: #{_net_forward_padded.1} parent=1 // pred_check
      _
    $region19: #{_net_forward_padded.1} parent=1 // pred_check_branch
      %31 = sbr.rel (0) target = $region21
    $region20: #{_net_forward_padded.1} parent=1 // pred_region
      _
    $region21: #{_net_forward_padded.1} parent=1 // pred_fallthru
      _
    // Predicated region
    $region22: #{_net_forward_padded.1} parent=1 // pred_check
      _
    $region23: #{_net_forward_padded.1} parent=1 // pred_check_branch
      %33 = sbr.rel (0) target = $region25
    $region24: #{_net_forward_padded.1} parent=1 // pred_region
      _
    $region25: #{_net_forward_padded.1} parent=1 // pred_fallthru
      _
    // Predicated region
    $region26: #{_net_forward_padded.1} parent=1 // pred_check
      _
    $region27: #{_net_forward_padded.1} parent=1 // pred_check_branch
      %35 = sbr.rel (0) target = $region29
    $region28: #{_net_forward_padded.1} parent=1 // pred_region
      %36 = dma.done [#allocation3], 3072
    $region29: #{_net_forward_padded.1} parent=1 // pred_fallthru
      _
    %v38 = vld [vmem:[%s3] sm:$0xf]
    %v39 = vld [vmem:[%s0] sm:$0xff]
    %v40 = vld [vmem:[%s1] sm:$0xff]
    %v41 = vlaneseq
    %v42 = vshrl.u32 %v41, 7
    %v43 = vsub.s32 0, %v42
    %v44 = vrot.slane %v38, %v43
    %vm45 = vcmask 64512
    %v47 = vsel %vm45, %v39, 0
    %49 = vmatprep.subr.mxu0 0.0
    %50 = vmatpush1.msra.mxu0 0.0
    %51 = vmatprep.subr.mxu0 0.0
    %52 = vmatpush1.msra.mxu0 0.0
    %53 = vmatprep.subr.mxu0 0.0
    %54 = vmatpush1.msra.mxu0 0.0
    %55 = vmatprep.subr.mxu0 0.0
    %56 = vmatpush1.msra.mxu0 0.0
    %57 = vmatprep.subr.mxu0 0.0
    %58 = vmatpush1.msra.mxu0 0.0
    %59 = vmatprep.subr.mxu0 0.0
    %60 = vmatpush1.msra.mxu0 0.0
    %61 = vmatprep.subr.mxu0 0.0
    %62 = vmatpush1.msra.mxu0 0.0
    %63 = vmatprep.subr.mxu0 0.0
    %64 = vmatpush1.msra.mxu0 0.0
    %65 = vmatprep.subr.mxu0 0.0
    %66 = vmatpush1.msra.mxu0 0.0
    %67 = vmatprep.subr.mxu0 0.0
    %68 = vmatpush1.msra.mxu0 0.0
    %69 = vmatprep.subr.mxu0 0.0
    %70 = vmatpush1.msra.mxu0 0.0
    %71 = vmatprep.subr.mxu0 0.0
    %72 = vmatpush1.msra.mxu0 0.0
    %73 = vmatprep.subr.mxu0 0.0
    %74 = vmatpush1.msra.mxu0 0.0
    %75 = vmatprep.subr.mxu0 0.0
    %76 = vmatpush1.msra.mxu0 0.0
    %77 = vmatprep.subr.mxu0 0.0
    %78 = vmatpush1.msra.mxu0 0.0
    %79 = vmatprep.subr.mxu0 0.0
    %80 = vmatpush1.msra.mxu0 %v40
    %81 = vmatprep.subr.mxu0 0.0
    %82 = vmatpush2.msra.mxu0 0.0
    %83 = vmatprep.subr.mxu0 0.0
    %84 = vmatpush2.msra.mxu0 0.0
    %85 = vmatprep.subr.mxu0 0.0
    %86 = vmatpush2.msra.mxu0 0.0
    %87 = vmatprep.subr.mxu0 0.0
    %88 = vmatpush2.msra.mxu0 0.0
    %89 = vmatprep.subr.mxu0 0.0
    %90 = vmatpush2.msra.mxu0 0.0
    %91 = vmatprep.subr.mxu0 0.0
    %92 = vmatpush2.msra.mxu0 0.0
    %93 = vmatprep.subr.mxu0 0.0
    %94 = vmatpush2.msra.mxu0 0.0
    %95 = vmatprep.subr.mxu0 0.0
    %96 = vmatpush2.msra.mxu0 0.0
    %97 = vmatprep.subr.mxu0 0.0
    %98 = vmatpush2.msra.mxu0 0.0
    %99 = vmatprep.subr.mxu0 0.0
    %100 = vmatpush2.msra.mxu0 0.0
    %101 = vmatprep.subr.mxu0 0.0
    %102 = vmatpush2.msra.mxu0 0.0
    %103 = vmatprep.subr.mxu0 0.0
    %104 = vmatpush2.msra.mxu0 0.0
    %105 = vmatprep.subr.mxu0 0.0
    %106 = vmatpush2.msra.mxu0 0.0
    %107 = vmatprep.subr.mxu0 0.0
    %108 = vmatpush2.msra.mxu0 0.0
    %109 = vmatprep.subr.mxu0 0.0
    %110 = vmatpush2.msra.mxu0 0.0
    %111 = vmatprep.subr.mxu0 0.0
    %112 = vmatpush2.msra.mxu0 0.0
    %113 = vmatprep.mubr.f32.mxu0 0.0
    %114 = vmatmul.mubr.f32.gmra.mxu0 %v47
    %v115 = vpop.f32.mrf.mxu0
    %v116 = vadd.f32 %v44, %v115
    %v117 = vpop.f32.mrf.mxu0
    %118 = vdwg.mxu0
    %v119 = vmax.f32 %v116, 0.0
    %v120 = vpack.c.bf16 %v119, %v119
    %v121 = vld [vmem:[#allocation2] sm:$0xf]
    %v122 = vld [vmem:[#allocation2 + $0x4] sm:$0xf]
    %v123 = vld [vmem:[#allocation2 + $0x8] sm:$0xf]
    %v124 = vld [vmem:[#allocation2 + $0xc] sm:$0xf]
    %v125 = vld [vmem:[#allocation2 + $0x10] sm:$0xf]
    %v126 = vld [vmem:[#allocation2 + $0x14] sm:$0xf]
    %v127 = vld [vmem:[#allocation2 + $0x18] sm:$0xf]
    %v128 = vld [vmem:[#allocation2 + $0x1c] sm:$0xf]
    %v129 = vld [vmem:[#allocation2 + $0x20] sm:$0xf]
    %v130 = vld [vmem:[#allocation2 + $0x24] sm:$0xf]
    %v131 = vld [vmem:[#allocation2 + $0x28] sm:$0xf]
    %v132 = vld [vmem:[#allocation2 + $0x2c] sm:$0xf]
    %v133 = vld [vmem:[#allocation2 + $0x30] sm:$0xf]
    %v134 = vld [vmem:[#allocation2 + $0x34] sm:$0xf]
    %v135 = vld [vmem:[#allocation2 + $0x38] sm:$0xf]
    %v136 = vld [vmem:[#allocation2 + $0x3c] sm:$0xf]
    %v137 = vlaneseq
    %v138 = vshrl.u32 %v137, 7
    %v139 = vsub.s32 1, %v138
    %v140 = vrot.slane %v38, %v139
    %v157 = vunpack.c.l.b16 %v121
    %v158 = vunpack.c.l.b16 %v122
    %v159 = vunpack.c.l.b16 %v123
    %v160 = vunpack.c.l.b16 %v124
    %v161 = vunpack.c.l.b16 %v125
    %v162 = vunpack.c.l.b16 %v126
    %v163 = vunpack.c.l.b16 %v127
    %v164 = vunpack.c.l.b16 %v128
    %v165 = vunpack.c.l.b16 %v129
    %v166 = vunpack.c.l.b16 %v130
    %v167 = vunpack.c.l.b16 %v131
    %v168 = vunpack.c.l.b16 %v132
    %v169 = vunpack.c.l.b16 %v133
    %v170 = vunpack.c.l.b16 %v134
    %v171 = vunpack.c.l.b16 %v135
    %v172 = vunpack.c.l.b16 %v136
    %v173 = vpack.c.b16 %v158, %v157
    %v174 = vpack.c.b16 %v160, %v159
    %v175 = vpack.c.b16 %v162, %v161
    %v176 = vpack.c.b16 %v164, %v163
    %v177 = vpack.c.b16 %v166, %v165
    %v178 = vpack.c.b16 %v168, %v167
    %v179 = vpack.c.b16 %v170, %v169
    %v180 = vpack.c.b16 %v172, %v171
    %189 = vmatprep.subr.bf16.mxu0 0
    %190 = vmatpush1.bf16.msra.mxu0 %v180
    %191 = vmatprep.subr.bf16.mxu0 0
    %192 = vmatpush1.bf16.msra.mxu0 %v179
    %193 = vmatprep.subr.bf16.mxu0 0
    %194 = vmatpush1.bf16.msra.mxu0 %v178
    %195 = vmatprep.subr.bf16.mxu0 0
    %196 = vmatpush1.bf16.msra.mxu0 %v177
    %197 = vmatprep.subr.bf16.mxu0 0
    %198 = vmatpush1.bf16.msra.mxu0 %v176
    %199 = vmatprep.subr.bf16.mxu0 0
    %200 = vmatpush1.bf16.msra.mxu0 %v175
    %201 = vmatprep.subr.bf16.mxu0 0
    %202 = vmatpush1.bf16.msra.mxu0 %v174
    %203 = vmatprep.subr.bf16.mxu0 0
    %204 = vmatpush1.bf16.msra.mxu0 %v173
    %205 = vmatprep.subr.bf16.mxu0 0
    %206 = vmatpush2.bf16.msra.mxu0 0
    %207 = vmatprep.subr.bf16.mxu0 0
    %208 = vmatpush2.bf16.msra.mxu0 0
    %209 = vmatprep.subr.bf16.mxu0 0
    %210 = vmatpush2.bf16.msra.mxu0 0
    %211 = vmatprep.subr.bf16.mxu0 0
    %212 = vmatpush2.bf16.msra.mxu0 0
    %213 = vmatprep.subr.bf16.mxu0 0
    %214 = vmatpush2.bf16.msra.mxu0 0
    %215 = vmatprep.subr.bf16.mxu0 0
    %216 = vmatpush2.bf16.msra.mxu0 0
    %217 = vmatprep.subr.bf16.mxu0 0
    %218 = vmatpush2.bf16.msra.mxu0 0
    %219 = vmatprep.subr.bf16.mxu0 0
    %220 = vmatpush2.bf16.msra.mxu0 0
    %221 = vmatprep.mubr.bf16.mxu0 0
    %222 = vmatmul.mubr.bf16.gmra.mxu0 %v120
    %v223 = vpop.f32.mrf.mxu0
    %v224 = vadd.f32 %v140, %v223
    %v225 = vpop.f32.mrf.mxu0
    %v226 = vpop.f32.mrf.mxu0
    %v227 = vpop.f32.mrf.mxu0
    %228 = vdwg.mxu0
    %v229 = vmax.f32 %v224, 0.0
    %v230 = vpack.c.bf16 %v229, %v229
    %s231 = scalar_lea.vmem [#allocation2], 64
    %v232 = vld [vmem:[%s231] sm:$0xf]
    %v233 = vld [vmem:[%s231 + $0x4] sm:$0xf]
    %v234 = vld [vmem:[%s231 + $0x8] sm:$0xf]
    %v235 = vld [vmem:[%s231 + $0xc] sm:$0xf]
    %v236 = vld [vmem:[%s231 + $0x10] sm:$0xf]
    %v237 = vld [vmem:[%s231 + $0x14] sm:$0xf]
    %v238 = vld [vmem:[%s231 + $0x18] sm:$0xf]
    %v239 = vld [vmem:[%s231 + $0x1c] sm:$0xf]
    %v240 = vld [vmem:[%s231 + $0x20] sm:$0xf]
    %v241 = vld [vmem:[%s231 + $0x24] sm:$0xf]
    %v242 = vld [vmem:[%s231 + $0x28] sm:$0xf]
    %v243 = vld [vmem:[%s231 + $0x2c] sm:$0xf]
    %v244 = vld [vmem:[%s231 + $0x30] sm:$0xf]
    %v245 = vld [vmem:[%s231 + $0x34] sm:$0xf]
    %v246 = vld [vmem:[%s231 + $0x38] sm:$0xf]
    %v247 = vld [vmem:[%s231 + $0x3c] sm:$0xf]
    %v248 = vlaneseq
    %v249 = vshrl.u32 %v248, 7
    %v250 = vsub.s32 2, %v249
    %v251 = vrot.slane %v38, %v250
    %v268 = vunpack.c.l.b16 %v232
    %v269 = vunpack.c.l.b16 %v233
    %v270 = vunpack.c.l.b16 %v234
    %v271 = vunpack.c.l.b16 %v235
    %v272 = vunpack.c.l.b16 %v236
    %v273 = vunpack.c.l.b16 %v237
    %v274 = vunpack.c.l.b16 %v238
    %v275 = vunpack.c.l.b16 %v239
    %v276 = vunpack.c.l.b16 %v240
    %v277 = vunpack.c.l.b16 %v241
    %v278 = vunpack.c.l.b16 %v242
    %v279 = vunpack.c.l.b16 %v243
    %v280 = vunpack.c.l.b16 %v244
    %v281 = vunpack.c.l.b16 %v245
    %v282 = vunpack.c.l.b16 %v246
    %v283 = vunpack.c.l.b16 %v247
    %v284 = vpack.c.b16 %v269, %v268
    %v285 = vpack.c.b16 %v271, %v270
    %v286 = vpack.c.b16 %v273, %v272
    %v287 = vpack.c.b16 %v275, %v274
    %v288 = vpack.c.b16 %v277, %v276
    %v289 = vpack.c.b16 %v279, %v278
    %v290 = vpack.c.b16 %v281, %v280
    %v291 = vpack.c.b16 %v283, %v282
    %300 = vmatprep.subr.bf16.mxu0 0
    %301 = vmatpush1.bf16.msra.mxu0 %v291
    %302 = vmatprep.subr.bf16.mxu0 0
    %303 = vmatpush1.bf16.msra.mxu0 %v290
    %304 = vmatprep.subr.bf16.mxu0 0
    %305 = vmatpush1.bf16.msra.mxu0 %v289
    %306 = vmatprep.subr.bf16.mxu0 0
    %307 = vmatpush1.bf16.msra.mxu0 %v288
    %308 = vmatprep.subr.bf16.mxu0 0
    %309 = vmatpush1.bf16.msra.mxu0 %v287
    %310 = vmatprep.subr.bf16.mxu0 0
    %311 = vmatpush1.bf16.msra.mxu0 %v286
    %312 = vmatprep.subr.bf16.mxu0 0
    %313 = vmatpush1.bf16.msra.mxu0 %v285
    %314 = vmatprep.subr.bf16.mxu0 0
    %315 = vmatpush1.bf16.msra.mxu0 %v284
    %316 = vmatprep.subr.bf16.mxu0 0
    %317 = vmatpush2.bf16.msra.mxu0 0
    %318 = vmatprep.subr.bf16.mxu0 0
    %319 = vmatpush2.bf16.msra.mxu0 0
    %320 = vmatprep.subr.bf16.mxu0 0
    %321 = vmatpush2.bf16.msra.mxu0 0
    %322 = vmatprep.subr.bf16.mxu0 0
    %323 = vmatpush2.bf16.msra.mxu0 0
    %324 = vmatprep.subr.bf16.mxu0 0
    %325 = vmatpush2.bf16.msra.mxu0 0
    %326 = vmatprep.subr.bf16.mxu0 0
    %327 = vmatpush2.bf16.msra.mxu0 0
    %328 = vmatprep.subr.bf16.mxu0 0
    %329 = vmatpush2.bf16.msra.mxu0 0
    %330 = vmatprep.subr.bf16.mxu0 0
    %331 = vmatpush2.bf16.msra.mxu0 0
    %332 = vmatprep.mubr.bf16.mxu0 0
    %333 = vmatmul.mubr.bf16.gmra.mxu0 %v230
    %v334 = vpop.f32.mrf.mxu0
    %v335 = vadd.f32 %v251, %v334
    %v336 = vpop.f32.mrf.mxu0
    %v337 = vpop.f32.mrf.mxu0
    %v338 = vpop.f32.mrf.mxu0
    %339 = vdwg.mxu0
    %v340 = vmax.f32 %v335, 0.0
    %v341 = vpack.c.bf16 %v340, %v340
    %s342 = scalar_lea.vmem [#allocation2], 128
    %v343 = vld [vmem:[%s342] sm:$0xf]
    %v344 = vld [vmem:[%s342 + $0x4] sm:$0xf]
    %v345 = vld [vmem:[%s342 + $0x8] sm:$0xf]
    %v346 = vld [vmem:[%s342 + $0xc] sm:$0xf]
    %v347 = vld [vmem:[%s342 + $0x10] sm:$0xf]
    %v348 = vld [vmem:[%s342 + $0x14] sm:$0xf]
    %v349 = vld [vmem:[%s342 + $0x18] sm:$0xf]
    %v350 = vld [vmem:[%s342 + $0x1c] sm:$0xf]
    %v351 = vld [vmem:[%s342 + $0x20] sm:$0xf]
    %v352 = vld [vmem:[%s342 + $0x24] sm:$0xf]
    %v353 = vld [vmem:[%s342 + $0x28] sm:$0xf]
    %v354 = vld [vmem:[%s342 + $0x2c] sm:$0xf]
    %v355 = vld [vmem:[%s342 + $0x30] sm:$0xf]
    %v356 = vld [vmem:[%s342 + $0x34] sm:$0xf]
    %v357 = vld [vmem:[%s342 + $0x38] sm:$0xf]
    %v358 = vld [vmem:[%s342 + $0x3c] sm:$0xf]
    %v359 = vlaneseq
    %v360 = vshrl.u32 %v359, 7
    %v361 = vsub.s32 3, %v360
    %v362 = vrot.slane %v38, %v361
    %v379 = vunpack.c.l.b16 %v343
    %v380 = vunpack.c.l.b16 %v344
    %v381 = vunpack.c.l.b16 %v345
    %v382 = vunpack.c.l.b16 %v346
    %v383 = vunpack.c.l.b16 %v347
    %v384 = vunpack.c.l.b16 %v348
    %v385 = vunpack.c.l.b16 %v349
    %v386 = vunpack.c.l.b16 %v350
    %v387 = vunpack.c.l.b16 %v351
    %v388 = vunpack.c.l.b16 %v352
    %v389 = vunpack.c.l.b16 %v353
    %v390 = vunpack.c.l.b16 %v354
    %v391 = vunpack.c.l.b16 %v355
    %v392 = vunpack.c.l.b16 %v356
    %v393 = vunpack.c.l.b16 %v357
    %v394 = vunpack.c.l.b16 %v358
    %v395 = vpack.c.b16 %v380, %v379
    %v396 = vpack.c.b16 %v382, %v381
    %v397 = vpack.c.b16 %v384, %v383
    %v398 = vpack.c.b16 %v386, %v385
    %v399 = vpack.c.b16 %v388, %v387
    %v400 = vpack.c.b16 %v390, %v389
    %v401 = vpack.c.b16 %v392, %v391
    %v402 = vpack.c.b16 %v394, %v393
    %411 = vmatprep.subr.bf16.mxu0 0
    %412 = vmatpush1.bf16.msra.mxu0 %v402
    %413 = vmatprep.subr.bf16.mxu0 0
    %414 = vmatpush1.bf16.msra.mxu0 %v401
    %415 = vmatprep.subr.bf16.mxu0 0
    %416 = vmatpush1.bf16.msra.mxu0 %v400
    %417 = vmatprep.subr.bf16.mxu0 0
    %418 = vmatpush1.bf16.msra.mxu0 %v399
    %419 = vmatprep.subr.bf16.mxu0 0
    %420 = vmatpush1.bf16.msra.mxu0 %v398
    %421 = vmatprep.subr.bf16.mxu0 0
    %422 = vmatpush1.bf16.msra.mxu0 %v397
    %423 = vmatprep.subr.bf16.mxu0 0
    %424 = vmatpush1.bf16.msra.mxu0 %v396
    %425 = vmatprep.subr.bf16.mxu0 0
    %426 = vmatpush1.bf16.msra.mxu0 %v395
    %427 = vmatprep.subr.bf16.mxu0 0
    %428 = vmatpush2.bf16.msra.mxu0 0
    %429 = vmatprep.subr.bf16.mxu0 0
    %430 = vmatpush2.bf16.msra.mxu0 0
    %431 = vmatprep.subr.bf16.mxu0 0
    %432 = vmatpush2.bf16.msra.mxu0 0
    %433 = vmatprep.subr.bf16.mxu0 0
    %434 = vmatpush2.bf16.msra.mxu0 0
    %435 = vmatprep.subr.bf16.mxu0 0
    %436 = vmatpush2.bf16.msra.mxu0 0
    %437 = vmatprep.subr.bf16.mxu0 0
    %438 = vmatpush2.bf16.msra.mxu0 0
    %439 = vmatprep.subr.bf16.mxu0 0
    %440 = vmatpush2.bf16.msra.mxu0 0
    %441 = vmatprep.subr.bf16.mxu0 0
    %442 = vmatpush2.bf16.msra.mxu0 0
    %443 = vmatprep.mubr.bf16.mxu0 0
    %444 = vmatmul.mubr.bf16.gmra.mxu0 %v341
    %v445 = vpop.f32.mrf.mxu0
    %v446 = vadd.f32 %v362, %v445
    %v447 = vpop.f32.mrf.mxu0
    %v448 = vpop.f32.mrf.mxu0
    %v449 = vpop.f32.mrf.mxu0
    %450 = vdwg.mxu0
    %v451 = vmax.f32 %v446, 0.0
    %v452 = vpack.c.bf16 %v451, %v451
    %v453 = vld [vmem:[%s4] sm:$0xf]
    %v454 = vld [vmem:[%s4 + $0x4] sm:$0xf]
    %v455 = vld [vmem:[%s4 + $0x8] sm:$0xf]
    %v456 = vld [vmem:[%s4 + $0xc] sm:$0xf]
    %v457 = vld [vmem:[%s4 + $0x10] sm:$0xf]
    %v458 = vld [vmem:[%s4 + $0x14] sm:$0xf]
    %v459 = vld [vmem:[%s4 + $0x18] sm:$0xf]
    %v460 = vld [vmem:[%s4 + $0x1c] sm:$0xf]
    %v461 = vld [vmem:[%s4 + $0x20] sm:$0xf]
    %v462 = vld [vmem:[%s4 + $0x24] sm:$0xf]
    %v463 = vld [vmem:[%s4 + $0x28] sm:$0xf]
    %v464 = vld [vmem:[%s4 + $0x2c] sm:$0xf]
    %v465 = vld [vmem:[%s4 + $0x30] sm:$0xf]
    %v466 = vld [vmem:[%s4 + $0x34] sm:$0xf]
    %v467 = vld [vmem:[%s4 + $0x38] sm:$0xf]
    %v468 = vld [vmem:[%s4 + $0x3c] sm:$0xf]
    %v469 = vld [vmem:[%s5] sm:$0x1]
    %v471 = vlaneseq
    %v472 = vshrl.u32 %v471, 7
    %v473 = vsub.s32 0, %v472
    %v474 = vrot.slane %v469, %v473
    %v492 = vunpack.c.l.b16 %v453
    %v493 = vunpack.c.l.b16 %v454
    %v494 = vunpack.c.l.b16 %v455
    %v495 = vunpack.c.l.b16 %v456
    %v496 = vunpack.c.l.b16 %v457
    %v497 = vunpack.c.l.b16 %v458
    %v498 = vunpack.c.l.b16 %v459
    %v499 = vunpack.c.l.b16 %v460
    %v500 = vunpack.c.l.b16 %v461
    %v501 = vunpack.c.l.b16 %v462
    %v502 = vunpack.c.l.b16 %v463
    %v503 = vunpack.c.l.b16 %v464
    %v504 = vunpack.c.l.b16 %v465
    %v505 = vunpack.c.l.b16 %v466
    %v506 = vunpack.c.l.b16 %v467
    %v507 = vunpack.c.l.b16 %v468
    %v508 = vpack.c.b16 %v493, %v492
    %v509 = vpack.c.b16 %v495, %v494
    %v510 = vpack.c.b16 %v497, %v496
    %v511 = vpack.c.b16 %v499, %v498
    %v512 = vpack.c.b16 %v501, %v500
    %v513 = vpack.c.b16 %v503, %v502
    %v514 = vpack.c.b16 %v505, %v504
    %v515 = vpack.c.b16 %v507, %v506
    %524 = vmatprep.subr.bf16.mxu0 0
    %525 = vmatpush1.bf16.msra.mxu0 %v515
    %526 = vmatprep.subr.bf16.mxu0 0
    %527 = vmatpush1.bf16.msra.mxu0 %v514
    %528 = vmatprep.subr.bf16.mxu0 0
    %529 = vmatpush1.bf16.msra.mxu0 %v513
    %530 = vmatprep.subr.bf16.mxu0 0
    %531 = vmatpush1.bf16.msra.mxu0 %v512
    %532 = vmatprep.subr.bf16.mxu0 0
    %533 = vmatpush1.bf16.msra.mxu0 %v511
    %534 = vmatprep.subr.bf16.mxu0 0
    %535 = vmatpush1.bf16.msra.mxu0 %v510
    %536 = vmatprep.subr.bf16.mxu0 0
    %537 = vmatpush1.bf16.msra.mxu0 %v509
    %538 = vmatprep.subr.bf16.mxu0 0
    %539 = vmatpush1.bf16.msra.mxu0 %v508
    %540 = vmatprep.subr.bf16.mxu0 0
    %541 = vmatpush2.bf16.msra.mxu0 0
    %542 = vmatprep.subr.bf16.mxu0 0
    %543 = vmatpush2.bf16.msra.mxu0 0
    %544 = vmatprep.subr.bf16.mxu0 0
    %545 = vmatpush2.bf16.msra.mxu0 0
    %546 = vmatprep.subr.bf16.mxu0 0
    %547 = vmatpush2.bf16.msra.mxu0 0
    %548 = vmatprep.subr.bf16.mxu0 0
    %549 = vmatpush2.bf16.msra.mxu0 0
    %550 = vmatprep.subr.bf16.mxu0 0
    %551 = vmatpush2.bf16.msra.mxu0 0
    %552 = vmatprep.subr.bf16.mxu0 0
    %553 = vmatpush2.bf16.msra.mxu0 0
    %554 = vmatprep.subr.bf16.mxu0 0
    %555 = vmatpush2.bf16.msra.mxu0 0
    %556 = vmatprep.mubr.bf16.mxu0 0
    %557 = vmatmul.mubr.bf16.gmra.mxu0 %v452
    %v558 = vpop.f32.mrf.mxu0
    %v559 = vadd.f32 %v474, %v558
    %v560 = vpop.f32.mrf.mxu0
    %v561 = vpop.f32.mrf.mxu0
    %v562 = vpop.f32.mrf.mxu0
    %563 = vdwg.mxu0
    %564 = vst.msk [vmem:[%s6] sm:$0xff] %vm45, %v559
    // Predicated region
    $region30: #{_net_forward_padded.1} parent=1 // pred_check
      _
    $region31: #{_net_forward_padded.1} parent=1 // pred_check_branch
      %566 = sbr.rel (0) target = $region33
    $region32: #{_net_forward_padded.1} parent=1 // pred_region
      _
    $region33: #{_net_forward_padded.1} parent=1 // pred_fallthru
      _
    // Predicated region
    $region34: #{_net_forward_padded.1} parent=1 // pred_check
      _
    $region35: #{_net_forward_padded.1} parent=1 // pred_check_branch
      %568 = sbr.rel (0) target = $region37
    $region36: #{_net_forward_padded.1} parent=1 // pred_region
      _
    $region37: #{_net_forward_padded.1} parent=1 // pred_fallthru
      _
    %569 = vsyncpa [#allocation3], 1

</llo_original>
